<compile_context>
chip_gen: v7x
topology: tpu7x:2x2x1
jax: 0.10.0
libtpu: 0.0.40
codegen_flags: <defaults>
</compile_context>

<pallas_src>
import jax
import jax.numpy as jnp
from jax import lax
from jax.experimental import pallas as pl
from jax.experimental.pallas import tpu as pltpu

HIDDEN = 64
DEFAULT_BLOCK_B = 2048  # batch-tile cap; big tiles amortize per-step overhead


def _round_up(n, m):
    return ((n + m - 1) // m) * m


def _critic_kernel(x_ref, w1_ref, b1_ref, w2_ref, b2_ref, w3_ref, b3_ref,
                   wq_ref, bq_ref, q_ref):
    # fc1 + ReLU: one fused matmul over the pre-concatenated input block.
    h = jnp.dot(x_ref[...], w1_ref[...], preferred_element_type=jnp.float32)
    h = jnp.maximum(h + b1_ref[...], 0.0)
    # fc2 + ReLU
    h = jnp.dot(h, w2_ref[...], preferred_element_type=jnp.float32)
    h = jnp.maximum(h + b2_ref[...], 0.0)
    # fc3 + ReLU
    h = jnp.dot(h, w3_ref[...], preferred_element_type=jnp.float32)
    h = jnp.maximum(h + b3_ref[...], 0.0)
    # q_out (64 -> 1), emitted lane-dense as a (1, TB) row:
    # contract (1,64) with (TB,64) on their last dims (attention-score style,
    # no materialized transpose) so the store stream is dense.
    q = lax.dot_general(wq_ref[...], h, (((1,), (1,)), ((), ())),
                        preferred_element_type=jnp.float32)
    q_ref[...] = (q + bq_ref[...]).astype(q_ref.dtype)


def _choose_tile(B, block_b):
    """Pick (tile_rows, grid_steps) for the batch axis.

    Tile rows are a multiple of 8 (f32 sublane), and a multiple of 128 when
    the grid has more than one step (keeps the lane-dense output blocks
    aligned).  For B > 128 the grid always has >= 2 steps so the "parallel"
    batch axis can shard across both TensorCores on v7x.
    """
    if B <= 128:
        return _round_up(B, 8), 1
    cap = max(128, _round_up(block_b, 128))
    tb = min(cap, max(128, _round_up(pl.cdiv(B, 2), 128)))
    return tb, pl.cdiv(B, tb)


def _resident(a):
    """Full-array block whose index_map is constant -> stays VMEM-resident."""
    nd = a.ndim
    return pl.BlockSpec(a.shape, lambda i: (0,) * nd)


def critic_forward(state_list, action_list, params, block_b=DEFAULT_BLOCK_B):
    """Critic forward pass.

    params = (w1, b1, w2, b2, w3, b3, wq, bq); weights stored as [in, out],
    biases as [1, out].
    """
    xs = list(state_list) + list(action_list)
    x = xs[0] if len(xs) == 1 else jnp.concatenate(xs, axis=1)
    B, in_dim = x.shape

    w1, b1, w2, b2, w3, b3, wq, bq = params
    wq_row = wq.reshape(1, HIDDEN)   # robust to (64,1), (1,64) or (64,)
    bq_2d = bq.reshape(1, 1)

    TB, G = _choose_tile(B, block_b)
    Bp = G * TB
    if B < TB:
        # Only the tiny single-block case needs (<= 7 rows of) padding; for
        # multi-step grids the tail block simply reads past the array end and
        # those rows are discarded by the final [:B] slice (no pad round-trip).
        x = jnp.pad(x, ((0, TB - B), (0, 0)))

    q_row = pl.pallas_call(
        _critic_kernel,
        out_shape=jax.ShapeDtypeStruct((1, Bp), jnp.float32),
        grid=(G,),
        in_specs=[pl.BlockSpec((TB, in_dim), lambda i: (i, 0)),
                  _resident(w1), _resident(b1),
                  _resident(w2), _resident(b2),
                  _resident(w3), _resident(b3),
                  _resident(wq_row), _resident(bq_2d)],
        out_specs=pl.BlockSpec((1, TB), lambda i: (0, i)),
        compiler_params=pltpu.CompilerParams(
            dimension_semantics=("parallel",)),
    )(x, w1, b1, w2, b2, w3, b3, wq_row, bq_2d)

    return q_row.reshape(-1)[:B].reshape(B, 1)


def init_params(key, in_dim):
    """Deterministic init mimicking nn.Linear's U(-1/sqrt(fan_in), 1/sqrt(fan_in)).

    Weights are stored transposed as [in, out]; biases as [1, out].
    """
    dims = [(in_dim, HIDDEN), (HIDDEN, HIDDEN), (HIDDEN, HIDDEN), (HIDDEN, 1)]
    params = []
    for (fan_in, fan_out) in dims:
        key, kw, kb = jax.random.split(key, 3)
        bound = 1.0 / jnp.sqrt(fan_in)
        w = jax.random.uniform(kw, (fan_in, fan_out), jnp.float32, -bound, bound)
        b = jax.random.uniform(kb, (1, fan_out), jnp.float32, -bound, bound)
        params += [w, b]
    return params


def reference_forward(state_list, action_list, params):
    x = jnp.concatenate(list(state_list) + list(action_list), axis=1)
    w1, b1, w2, b2, w3, b3, wq, bq = params
    h = jnp.maximum(x @ w1 + b1, 0.0)
    h = jnp.maximum(h @ w2 + b2, 0.0)
    h = jnp.maximum(h @ w3 + b3, 0.0)
    return h @ wq + bq


def _make_inputs(key, batch, obs_shape, action_shape):
    n_agents = len(obs_shape)
    key, *subkeys = jax.random.split(key, 1 + 2 * n_agents)
    state_list = [
        jax.random.normal(subkeys[i], (batch, obs_shape[i]), jnp.float32)
        for i in range(n_agents)
    ]
    action_list = [
        jax.random.normal(subkeys[n_agents + i], (batch, action_shape[i]),
                          jnp.float32)
        for i in range(n_agents)
    ]
    return key, state_list, action_list


if __name__ == "__main__":
    key = jax.random.PRNGKey(0)

    # Small multi-agent setting: 3 agents, obs dim 6 each, action dim 2 each.
    obs_shape = [6, 6, 6]
    action_shape = [2, 2, 2]
    in_dim = sum(obs_shape) + sum(action_shape)  # 24

    key, pkey = jax.random.split(key)
    params = init_params(pkey, in_dim)

    # --- check 1: tiny batch (single grid step, full blocks) ---
    batch = 8
    key, state_list, action_list = _make_inputs(key, batch, obs_shape, action_shape)
    q = critic_forward(state_list, action_list, params)
    q = jax.block_until_ready(q)
    q_ref = reference_forward(state_list, action_list, params)
    assert q.shape == (batch, 1)
    assert jnp.allclose(q, q_ref, atol=1e-4, rtol=1e-5)

    # --- check 2: multi-step grid with a partial tail block (no padding) ---
    batch2 = 260
    key, state_list2, action_list2 = _make_inputs(key, batch2, obs_shape, action_shape)
    q2 = critic_forward(state_list2, action_list2, params)  # TB=256, grid=(2,)
    q2 = jax.block_until_ready(q2)
    q2_ref = reference_forward(state_list2, action_list2, params)
    assert q2.shape == (batch2, 1)
    assert jnp.allclose(q2, q2_ref, atol=1e-4, rtol=1e-5)

    # --- check 3: smaller tile cap -> 3 grid steps, still partial tail ---
    batch3 = 300
    key, state_list3, action_list3 = _make_inputs(key, batch3, obs_shape, action_shape)
    q3 = critic_forward(state_list3, action_list3, params, block_b=128)  # TB=128, grid=(3,)
    q3 = jax.block_until_ready(q3)
    q3_ref = reference_forward(state_list3, action_list3, params)
    assert q3.shape == (batch3, 1)
    assert jnp.allclose(q3, q3_ref, atol=1e-4, rtol=1e-5)

    print("KERNEL_OK")
</pallas_src>

<mosaic_0001>
module attributes {stable_mosaic.version = 11 : i64} {
  func.func @_critic_kernel(%arg0: i32, %arg1: memref<8x24xf32, #tpu.memory_space<vmem>>, %arg2: memref<24x64xf32, #tpu.memory_space<vmem>>, %arg3: memref<1x64xf32, #tpu.memory_space<vmem>>, %arg4: memref<64x64xf32, #tpu.memory_space<vmem>>, %arg5: memref<1x64xf32, #tpu.memory_space<vmem>>, %arg6: memref<64x64xf32, #tpu.memory_space<vmem>>, %arg7: memref<1x64xf32, #tpu.memory_space<vmem>>, %arg8: memref<1x64xf32, #tpu.memory_space<vmem>>, %arg9: memref<1x1xf32, #tpu.memory_space<vmem>>, %arg10: memref<1x8xf32, #tpu.memory_space<vmem>>) attributes {dimension_semantics = [#tpu.dimension_semantics<parallel>], iteration_bounds = array<i64: 1>, scalar_prefetch = 0 : i64, scratch_operands = 0 : i64, tpu.core_type = #tpu.core_type<tc>, window_params = [{transform_indices = @transform_0, window_bounds = array<i64: 8, 24>}, {pipeline_mode = #tpu.pipeline_mode<synchronous>, transform_indices = @transform_1, window_bounds = array<i64: 24, 64>}, {pipeline_mode = #tpu.pipeline_mode<synchronous>, transform_indices = @transform_2, window_bounds = array<i64: 1, 64>}, {pipeline_mode = #tpu.pipeline_mode<synchronous>, transform_indices = @transform_3, window_bounds = array<i64: 64, 64>}, {pipeline_mode = #tpu.pipeline_mode<synchronous>, transform_indices = @transform_4, window_bounds = array<i64: 1, 64>}, {pipeline_mode = #tpu.pipeline_mode<synchronous>, transform_indices = @transform_5, window_bounds = array<i64: 64, 64>}, {pipeline_mode = #tpu.pipeline_mode<synchronous>, transform_indices = @transform_6, window_bounds = array<i64: 1, 64>}, {pipeline_mode = #tpu.pipeline_mode<synchronous>, transform_indices = @transform_7, window_bounds = array<i64: 1, 64>}, {pipeline_mode = #tpu.pipeline_mode<synchronous>, transform_indices = @transform_8, window_bounds = array<i64: 1, 1>}, {transform_indices = @transform_9, window_bounds = array<i64: 1, 8>}]} {
    %c0 = arith.constant 0 : index
    %c0_0 = arith.constant 0 : index
    %0 = vector.load %arg1[%c0, %c0_0] : memref<8x24xf32, #tpu.memory_space<vmem>>, vector<8x24xf32>
    %c0_1 = arith.constant 0 : index
    %c0_2 = arith.constant 0 : index
    %1 = vector.load %arg2[%c0_1, %c0_2] : memref<24x64xf32, #tpu.memory_space<vmem>>, vector<24x64xf32>
    %cst = arith.constant dense<0.000000e+00> : vector<8x64xf32>
    %2 = tpu.matmul %0, %1, %cst {dimension_numbers = #tpu.dot_dimension_numbers<[1], [0], [0], [1], [0, 0, 1, 1], [], []>} : vector<8x24xf32>, vector<24x64xf32>, vector<8x64xf32> -> vector<8x64xf32>
    %c0_3 = arith.constant 0 : index
    %c0_4 = arith.constant 0 : index
    %3 = vector.load %arg3[%c0_3, %c0_4] : memref<1x64xf32, #tpu.memory_space<vmem>>, vector<1x64xf32>
    %4 = vector.broadcast %3 : vector<1x64xf32> to vector<8x64xf32>
    %5 = arith.addf %2, %4 : vector<8x64xf32>
    %cst_5 = arith.constant 0.000000e+00 : f32
    %6 = vector.broadcast %cst_5 : f32 to vector<8x64xf32>
    %7 = arith.maximumf %5, %6 : vector<8x64xf32>
    %c0_6 = arith.constant 0 : index
    %c0_7 = arith.constant 0 : index
    %8 = vector.load %arg4[%c0_6, %c0_7] : memref<64x64xf32, #tpu.memory_space<vmem>>, vector<64x64xf32>
    %cst_8 = arith.constant dense<0.000000e+00> : vector<8x64xf32>
    %9 = tpu.matmul %7, %8, %cst_8 {dimension_numbers = #tpu.dot_dimension_numbers<[1], [0], [0], [1], [0, 0, 1, 1], [], []>} : vector<8x64xf32>, vector<64x64xf32>, vector<8x64xf32> -> vector<8x64xf32>
    %c0_9 = arith.constant 0 : index
    %c0_10 = arith.constant 0 : index
    %10 = vector.load %arg5[%c0_9, %c0_10] : memref<1x64xf32, #tpu.memory_space<vmem>>, vector<1x64xf32>
    %11 = vector.broadcast %10 : vector<1x64xf32> to vector<8x64xf32>
    %12 = arith.addf %9, %11 : vector<8x64xf32>
    %cst_11 = arith.constant 0.000000e+00 : f32
    %13 = vector.broadcast %cst_11 : f32 to vector<8x64xf32>
    %14 = arith.maximumf %12, %13 : vector<8x64xf32>
    %c0_12 = arith.constant 0 : index
    %c0_13 = arith.constant 0 : index
    %15 = vector.load %arg6[%c0_12, %c0_13] : memref<64x64xf32, #tpu.memory_space<vmem>>, vector<64x64xf32>
    %cst_14 = arith.constant dense<0.000000e+00> : vector<8x64xf32>
    %16 = tpu.matmul %14, %15, %cst_14 {dimension_numbers = #tpu.dot_dimension_numbers<[1], [0], [0], [1], [0, 0, 1, 1], [], []>} : vector<8x64xf32>, vector<64x64xf32>, vector<8x64xf32> -> vector<8x64xf32>
    %c0_15 = arith.constant 0 : index
    %c0_16 = arith.constant 0 : index
    %17 = vector.load %arg7[%c0_15, %c0_16] : memref<1x64xf32, #tpu.memory_space<vmem>>, vector<1x64xf32>
    %18 = vector.broadcast %17 : vector<1x64xf32> to vector<8x64xf32>
    %19 = arith.addf %16, %18 : vector<8x64xf32>
    %cst_17 = arith.constant 0.000000e+00 : f32
    %20 = vector.broadcast %cst_17 : f32 to vector<8x64xf32>
    %21 = arith.maximumf %19, %20 : vector<8x64xf32>
    %c0_18 = arith.constant 0 : index
    %c0_19 = arith.constant 0 : index
    %22 = vector.load %arg8[%c0_18, %c0_19] : memref<1x64xf32, #tpu.memory_space<vmem>>, vector<1x64xf32>
    %cst_20 = arith.constant dense<0.000000e+00> : vector<1x8xf32>
    %23 = tpu.matmul %22, %21, %cst_20 {dimension_numbers = #tpu.dot_dimension_numbers<[1], [1], [0], [0], [0, 0, 1, 0], [], []>} : vector<1x64xf32>, vector<8x64xf32>, vector<1x8xf32> -> vector<1x8xf32>
    %c0_21 = arith.constant 0 : index
    %c0_22 = arith.constant 0 : index
    %24 = vector.load %arg9[%c0_21, %c0_22] : memref<1x1xf32, #tpu.memory_space<vmem>>, vector<1x1xf32>
    %25 = vector.broadcast %24 : vector<1x1xf32> to vector<1x8xf32>
    %26 = arith.addf %23, %25 : vector<1x8xf32>
    %c0_23 = arith.constant 0 : index
    %c0_24 = arith.constant 0 : index
    %27 = vector.load %arg10[%c0_23, %c0_24] : memref<1x8xf32, #tpu.memory_space<vmem>>, vector<1x8xf32>
    tpu.vector_store %arg10[%c0_23, %c0_24], %26 {strides = array<i32>} : memref<1x8xf32, #tpu.memory_space<vmem>>, vector<1x8xf32>,
    return
  }
  func.func @transform_0(%arg0: i32) -> (i32, i32) {
    %c0_i32 = arith.constant 0 : i32
    %c0_i32_0 = arith.constant 0 : i32
    return %arg0, %c0_i32 : i32, i32
  }
  func.func @transform_1(%arg0: i32) -> (i32, i32) {
    %c0_i32 = arith.constant 0 : i32
    %c0_i32_0 = arith.constant 0 : i32
    %c0_i32_1 = arith.constant 0 : i32
    return %c0_i32, %c0_i32_0 : i32, i32
  }
  func.func @transform_2(%arg0: i32) -> (i32, i32) {
    %c0_i32 = arith.constant 0 : i32
    %c0_i32_0 = arith.constant 0 : i32
    %c0_i32_1 = arith.constant 0 : i32
    return %c0_i32, %c0_i32_0 : i32, i32
  }
  func.func @transform_3(%arg0: i32) -> (i32, i32) {
    %c0_i32 = arith.constant 0 : i32
    %c0_i32_0 = arith.constant 0 : i32
    %c0_i32_1 = arith.constant 0 : i32
    return %c0_i32, %c0_i32_0 : i32, i32
  }
  func.func @transform_4(%arg0: i32) -> (i32, i32) {
    %c0_i32 = arith.constant 0 : i32
    %c0_i32_0 = arith.constant 0 : i32
    %c0_i32_1 = arith.constant 0 : i32
    return %c0_i32, %c0_i32_0 : i32, i32
  }
  func.func @transform_5(%arg0: i32) -> (i32, i32) {
    %c0_i32 = arith.constant 0 : i32
    %c0_i32_0 = arith.constant 0 : i32
    %c0_i32_1 = arith.constant 0 : i32
    return %c0_i32, %c0_i32_0 : i32, i32
  }
  func.func @transform_6(%arg0: i32) -> (i32, i32) {
    %c0_i32 = arith.constant 0 : i32
    %c0_i32_0 = arith.constant 0 : i32
    %c0_i32_1 = arith.constant 0 : i32
    return %c0_i32, %c0_i32_0 : i32, i32
  }
  func.func @transform_7(%arg0: i32) -> (i32, i32) {
    %c0_i32 = arith.constant 0 : i32
    %c0_i32_0 = arith.constant 0 : i32
    %c0_i32_1 = arith.constant 0 : i32
    return %c0_i32, %c0_i32_0 : i32, i32
  }
  func.func @transform_8(%arg0: i32) -> (i32, i32) {
    %c0_i32 = arith.constant 0 : i32
    %c0_i32_0 = arith.constant 0 : i32
    %c0_i32_1 = arith.constant 0 : i32
    return %c0_i32, %c0_i32_0 : i32, i32
  }
  func.func @transform_9(%arg0: i32) -> (i32, i32) {
    %c0_i32 = arith.constant 0 : i32
    %c0_i32_0 = arith.constant 0 : i32
    return %c0_i32, %arg0 : i32, i32
  }
}

</mosaic_0001>

<llo_original>
// kernel: tpu_custom_call.1
$region0: #{tpu_custom_call.1}
  #allocation0 [shape = 'u32[]', space=smem, size = 0x4, offset = 0x4, fixed_abs, tag = 'smem constant byte address 0x4 - core index']
  #allocation1 [shape = 'u32[144,128]{1,0:T(1,128)}', space=vmem, size = 0x12000, scoped, tag = 'internal scratch']
  #allocation2 [shape = 'f32[1,1]{1,0:T(1,128)S(1)}', space=vmem, size = 0x200, scoped, tag = 'scoped memory for tpu_custom_call.1']
  %s0 = inlined_call_operand.hbm [shape: f32[8,24], index: 0, kind: input, shape index: {}]
  %s1 = inlined_call_operand.hbm [shape: f32[24,64], index: 1, kind: input, shape index: {}]
  %s2 = inlined_call_operand.vmem [shape: f32[1,64], index: 2, kind: input, shape index: {}]
  %s3 = inlined_call_operand.hbm [shape: f32[64,64], index: 3, kind: input, shape index: {}]
  %s4 = inlined_call_operand.vmem [shape: f32[1,64], index: 4, kind: input, shape index: {}]
  %s5 = inlined_call_operand.hbm [shape: f32[64,64], index: 5, kind: input, shape index: {}]
  %s6 = inlined_call_operand.vmem [shape: f32[1,64], index: 6, kind: input, shape index: {}]
  %s7 = inlined_call_operand.vmem [shape: f32[1,64], index: 7, kind: input, shape index: {}]
  %s8 = inlined_call_operand.<no memory space> [shape: f32[1,1], index: 8, kind: input, shape index: {}]
  %s9 = inlined_call_operand.hbm [shape: f32[1,8], index: 9, kind: output, shape index: {}]
  %s10 = sld [smem:[#allocation0]]
  $region62: #{tpu_custom_call.1} parent=0
    _
  %s12 = ssub.s32 1, %s10
  %s13 = scalar_select 0, %s12, %s10
  %v14 = vstv %s8
  %15 = vst [vmem:[#allocation2] sm:$0x1] %v14
  $region1: #{tpu_custom_call.1} parent=0
    #allocation3 [shape = 'u8[4096]{0}', space=vmem, size = 0x1000, scoped, tag = 'input window, operand 0, single buffered']
    #allocation4 [shape = 's32[1]{0}', space=sflag, size = 0x4, scoped, tag = 'scoped memory for tpu_custom_call.1']
    #allocation5 [shape = 's32[1]{0}', space=sflag, size = 0x4, scoped, tag = 'scoped memory for tpu_custom_call.1']
    #allocation6 [shape = 'u8[12288]{0}', space=vmem, size = 0x3000, scoped, tag = 'input window, operand 1, single buffered']
    #allocation7 [shape = 's32[1]{0}', space=sflag, size = 0x4, scoped, tag = 'scoped memory for tpu_custom_call.1']
    #allocation8 [shape = 'u8[32768]{0}', space=vmem, size = 0x8000, scoped, tag = 'input window, operand 3, single buffered']
    #allocation9 [shape = 'u8[32768]{0}', space=vmem, size = 0x8000, scoped, tag = 'input window, operand 5, single buffered']
    #allocation10 [shape = 's32[1]{0}', space=sflag, size = 0x4, scoped, tag = 'scoped memory for tpu_custom_call.1']
    #allocation11 [shape = 'u8[512]{0}', space=vmem, size = 0x400, scoped, tag = 'output window, operand 0, single buffered']
    %16 = vsyncpa [#allocation4], 0
    %17 = vsyncpa [#allocation7], 0
    %18 = vsyncpa [#allocation10], 0
    %19 = vsyncpa [#allocation5], 0
    // Predicated region
    $region2: #{tpu_custom_call.1} parent=1 // pred_check
      _
    $region3: #{tpu_custom_call.1} parent=1 // pred_check_branch
      %21 = sbr.rel (0) target = $region5
    $region4: #{tpu_custom_call.1} parent=1 // pred_region
      %s23 = ssub.s32 128, 128
      %24 = vsyncadd [#allocation4], %s23
      %s26 = sshll.u32 [#allocation3], 4
      %s27 = int_to_ptr.vmem [resolvable:$true] %s26
      %29 = dma.hbm_to_vmem [thread:$0]  %s0, 128, %s27, [#allocation4]
    $region5: #{tpu_custom_call.1} parent=1 // pred_fallthru
      _
    // Predicated region
    $region6: #{tpu_custom_call.1} parent=1 // pred_check
      _
    $region7: #{tpu_custom_call.1} parent=1 // pred_check_branch
      %31 = sbr.rel (0) target = $region9
    $region8: #{tpu_custom_call.1} parent=1 // pred_region
      %s33 = ssub.s32 384, 384
      %34 = vsyncadd [#allocation7], %s33
      %s35 = sshll.u32 [#allocation6], 4
      %s36 = int_to_ptr.vmem [resolvable:$true] %s35
      %41 = dma.hbm_to_vmem [thread:$0]  %s1, 384, %s36, [#allocation7], 128, 128, 8
    $region9: #{tpu_custom_call.1} parent=1 // pred_fallthru
      _
    // Predicated region
    $region10: #{tpu_custom_call.1} parent=1 // pred_check
      _
    $region11: #{tpu_custom_call.1} parent=1 // pred_check_branch
      %43 = sbr.rel (0) target = $region13
    $region12: #{tpu_custom_call.1} parent=1 // pred_region
      _
    $region13: #{tpu_custom_call.1} parent=1 // pred_fallthru
      _
    // Predicated region
    $region14: #{tpu_custom_call.1} parent=1 // pred_check
      _
    $region15: #{tpu_custom_call.1} parent=1 // pred_check_branch
      %45 = sbr.rel (0) target = $region17
    $region16: #{tpu_custom_call.1} parent=1 // pred_region
      %s47 = ssub.s32 1024, 1024
      %48 = vsyncadd [#allocation7], %s47
      %s49 = sshll.u32 [#allocation8], 4
      %s50 = int_to_ptr.vmem [resolvable:$true] %s49
      %55 = dma.hbm_to_vmem [thread:$0]  %s3, 1024, %s50, [#allocation7], 128, 128, 8
    $region17: #{tpu_custom_call.1} parent=1 // pred_fallthru
      _
    // Predicated region
    $region18: #{tpu_custom_call.1} parent=1 // pred_check
      _
    $region19: #{tpu_custom_call.1} parent=1 // pred_check_branch
      %57 = sbr.rel (0) target = $region21
    $region20: #{tpu_custom_call.1} parent=1 // pred_region
      _
    $region21: #{tpu_custom_call.1} parent=1 // pred_fallthru
      _
    // Predicated region
    $region22: #{tpu_custom_call.1} parent=1 // pred_check
      _
    $region23: #{tpu_custom_call.1} parent=1 // pred_check_branch
      %59 = sbr.rel (0) target = $region25
    $region24: #{tpu_custom_call.1} parent=1 // pred_region
      %s61 = ssub.s32 1024, 1024
      %62 = vsyncadd [#allocation10], %s61
      %s63 = sshll.u32 [#allocation9], 4
      %s64 = int_to_ptr.vmem [resolvable:$true] %s63
      %69 = dma.hbm_to_vmem [thread:$0]  %s5, 1024, %s64, [#allocation10], 128, 128, 8
    $region25: #{tpu_custom_call.1} parent=1 // pred_fallthru
      _
    // Predicated region
    $region26: #{tpu_custom_call.1} parent=1 // pred_check
      _
    $region27: #{tpu_custom_call.1} parent=1 // pred_check_branch
      %71 = sbr.rel (0) target = $region29
    $region28: #{tpu_custom_call.1} parent=1 // pred_region
      _
    $region29: #{tpu_custom_call.1} parent=1 // pred_fallthru
      _
    // Predicated region
    $region30: #{tpu_custom_call.1} parent=1 // pred_check
      _
    $region31: #{tpu_custom_call.1} parent=1 // pred_check_branch
      %73 = sbr.rel (0) target = $region33
    $region32: #{tpu_custom_call.1} parent=1 // pred_region
      _
    $region33: #{tpu_custom_call.1} parent=1 // pred_fallthru
      _
    // Predicated region
    $region34: #{tpu_custom_call.1} parent=1 // pred_check
      _
    $region35: #{tpu_custom_call.1} parent=1 // pred_check_branch
      %75 = sbr.rel (0) target = $region37
    $region36: #{tpu_custom_call.1} parent=1 // pred_region
      _
    $region37: #{tpu_custom_call.1} parent=1 // pred_fallthru
      _
    // Predicated region
    $region38: #{tpu_custom_call.1} parent=1 // pred_check
      _
    $region39: #{tpu_custom_call.1} parent=1 // pred_check_branch
      %77 = sbr.rel (0) target = $region41
    $region40: #{tpu_custom_call.1} parent=1 // pred_region
      %78 = dma.done [#allocation4], 128
    $region41: #{tpu_custom_call.1} parent=1 // pred_fallthru
      _
    // Predicated region
    $region42: #{tpu_custom_call.1} parent=1 // pred_check
      _
    $region43: #{tpu_custom_call.1} parent=1 // pred_check_branch
      %80 = sbr.rel (0) target = $region45
    $region44: #{tpu_custom_call.1} parent=1 // pred_region
      %81 = dma.done [#allocation7], 384
    $region45: #{tpu_custom_call.1} parent=1 // pred_fallthru
      _
    // Predicated region
    $region46: #{tpu_custom_call.1} parent=1 // pred_check
      _
    $region47: #{tpu_custom_call.1} parent=1 // pred_check_branch
      %83 = sbr.rel (0) target = $region49
    $region48: #{tpu_custom_call.1} parent=1 // pred_region
      %84 = dma.done [#allocation7], 1024
    $region49: #{tpu_custom_call.1} parent=1 // pred_fallthru
      _
    // Predicated region
    $region50: #{tpu_custom_call.1} parent=1 // pred_check
      _
    $region51: #{tpu_custom_call.1} parent=1 // pred_check_branch
      %86 = sbr.rel (0) target = $region53
    $region52: #{tpu_custom_call.1} parent=1 // pred_region
      %87 = dma.done [#allocation10], 1024
    $region53: #{tpu_custom_call.1} parent=1 // pred_fallthru
      _
    %v88 = vld [vmem:[#allocation3] sm:$0xff]
    %v89 = vld [vmem:[#allocation6] sm:$0xff]
    %v90 = vld [vmem:[#allocation6 + $0x8] sm:$0xff]
    %v91 = vld [vmem:[#allocation6 + $0x10] sm:$0xff]
    %v92 = vld [vmem:[%s2] sm:$0x1]
    %v94 = vlaneseq
    %v95 = vshrl.u32 %v94, 7
    %v96 = vsub.s32 0, %v95
    %v97 = vrot.slane %v92, %v96
    %vm99 = vcmask 195584
    %v101 = vsel %vm99, %v88, 0
    %103 = vmatprep.subr.mxu0 0.0
    %104 = vmatpush1.msra.mxu0 %v89
    %105 = vmatprep.subr.mxu0 0.0
    %106 = vmatpush1.msra.mxu0 %v90
    %107 = vmatprep.subr.mxu0 0.0
    %108 = vmatpush1.msra.mxu0 %v91
    %109 = vmatprep.subr.mxu0 0.0
    %110 = vmatpush1.msra.mxu0 0.0
    %111 = vmatprep.subr.mxu0 0.0
    %112 = vmatpush1.msra.mxu0 0.0
    %113 = vmatprep.subr.mxu0 0.0
    %114 = vmatpush1.msra.mxu0 0.0
    %115 = vmatprep.subr.mxu0 0.0
    %116 = vmatpush1.msra.mxu0 0.0
    %117 = vmatprep.subr.mxu0 0.0
    %118 = vmatpush1.msra.mxu0 0.0
    %119 = vmatprep.subr.mxu0 0.0
    %120 = vmatpush1.msra.mxu0 0.0
    %121 = vmatprep.subr.mxu0 0.0
    %122 = vmatpush1.msra.mxu0 0.0
    %123 = vmatprep.subr.mxu0 0.0
    %124 = vmatpush1.msra.mxu0 0.0
    %125 = vmatprep.subr.mxu0 0.0
    %126 = vmatpush1.msra.mxu0 0.0
    %127 = vmatprep.subr.mxu0 0.0
    %128 = vmatpush1.msra.mxu0 0.0
    %129 = vmatprep.subr.mxu0 0.0
    %130 = vmatpush1.msra.mxu0 0.0
    %131 = vmatprep.subr.mxu0 0.0
    %132 = vmatpush1.msra.mxu0 0.0
    %133 = vmatprep.subr.mxu0 0.0
    %134 = vmatpush1.msra.mxu0 0.0
    %135 = vmatprep.subr.mxu0 0.0
    %136 = vmatpush1.msra.mxu0 0.0
    %137 = vmatprep.subr.mxu0 0.0
    %138 = vmatpush1.msra.mxu0 0.0
    %139 = vmatprep.subr.mxu0 0.0
    %140 = vmatpush1.msra.mxu0 0.0
    %141 = vmatprep.subr.mxu0 0.0
    %142 = vmatpush1.msra.mxu0 0.0
    %143 = vmatprep.subr.mxu0 0.0
    %144 = vmatpush1.msra.mxu0 0.0
    %145 = vmatprep.subr.mxu0 0.0
    %146 = vmatpush1.msra.mxu0 0.0
    %147 = vmatprep.subr.mxu0 0.0
    %148 = vmatpush1.msra.mxu0 0.0
    %149 = vmatprep.subr.mxu0 0.0
    %150 = vmatpush1.msra.mxu0 0.0
    %151 = vmatprep.subr.mxu0 0.0
    %152 = vmatpush1.msra.mxu0 0.0
    %153 = vmatprep.subr.mxu0 0.0
    %154 = vmatpush1.msra.mxu0 0.0
    %155 = vmatprep.subr.mxu0 0.0
    %156 = vmatpush1.msra.mxu0 0.0
    %157 = vmatprep.subr.mxu0 0.0
    %158 = vmatpush1.msra.mxu0 0.0
    %159 = vmatprep.subr.mxu0 0.0
    %160 = vmatpush1.msra.mxu0 0.0
    %161 = vmatprep.subr.mxu0 0.0
    %162 = vmatpush1.msra.mxu0 0.0
    %163 = vmatprep.subr.mxu0 0.0
    %164 = vmatpush1.msra.mxu0 0.0
    %165 = vmatprep.subr.mxu0 0.0
    %166 = vmatpush1.msra.mxu0 0.0
    %167 = vmatprep.mubr.f32.mxu0 0.0
    %168 = vmatmul.mubr.f32.gmra.mrb[0].mxu0 %v101
    %v169 = vpop.f32.mrb[0].mxu0
    %v170 = vadd.f32 %v97, %v169
    %v171 = vpop.f32.mrb[0].mxu0
    %172 = vdwg.mxu0
    %v173 = vmax.f32 %v170, 0.0
    %v174 = vld [vmem:[#allocation8] sm:$0xff]
    %v175 = vld [vmem:[#allocation8 + $0x8] sm:$0xff]
    %v176 = vld [vmem:[#allocation8 + $0x10] sm:$0xff]
    %v177 = vld [vmem:[#allocation8 + $0x18] sm:$0xff]
    %v178 = vld [vmem:[#allocation8 + $0x20] sm:$0xff]
    %v179 = vld [vmem:[#allocation8 + $0x28] sm:$0xff]
    %v180 = vld [vmem:[#allocation8 + $0x30] sm:$0xff]
    %v181 = vld [vmem:[#allocation8 + $0x38] sm:$0xff]
    %v182 = vld [vmem:[%s4] sm:$0x1]
    %v184 = vlaneseq
    %v185 = vshrl.u32 %v184, 7
    %v186 = vsub.s32 0, %v185
    %v187 = vrot.slane %v182, %v186
    %vm189 = vcmask 523264
    %v191 = vsel %vm189, %v173, 0
    %193 = vmatprep.subr.mxu0 0.0
    %194 = vmatpush1.msra.mxu0 %v174
    %195 = vmatprep.subr.mxu0 0.0
    %196 = vmatpush1.msra.mxu0 %v175
    %197 = vmatprep.subr.mxu0 0.0
    %198 = vmatpush1.msra.mxu0 %v176
    %199 = vmatprep.subr.mxu0 0.0
    %200 = vmatpush1.msra.mxu0 %v177
    %201 = vmatprep.subr.mxu0 0.0
    %202 = vmatpush1.msra.mxu0 %v178
    %203 = vmatprep.subr.mxu0 0.0
    %204 = vmatpush1.msra.mxu0 %v179
    %205 = vmatprep.subr.mxu0 0.0
    %206 = vmatpush1.msra.mxu0 %v180
    %207 = vmatprep.subr.mxu0 0.0
    %208 = vmatpush1.msra.mxu0 %v181
    %209 = vmatprep.subr.mxu0 0.0
    %210 = vmatpush1.msra.mxu0 0.0
    %211 = vmatprep.subr.mxu0 0.0
    %212 = vmatpush1.msra.mxu0 0.0
    %213 = vmatprep.subr.mxu0 0.0
    %214 = vmatpush1.msra.mxu0 0.0
    %215 = vmatprep.subr.mxu0 0.0
    %216 = vmatpush1.msra.mxu0 0.0
    %217 = vmatprep.subr.mxu0 0.0
    %218 = vmatpush1.msra.mxu0 0.0
    %219 = vmatprep.subr.mxu0 0.0
    %220 = vmatpush1.msra.mxu0 0.0
    %221 = vmatprep.subr.mxu0 0.0
    %222 = vmatpush1.msra.mxu0 0.0
    %223 = vmatprep.subr.mxu0 0.0
    %224 = vmatpush1.msra.mxu0 0.0
    %225 = vmatprep.subr.mxu0 0.0
    %226 = vmatpush1.msra.mxu0 0.0
    %227 = vmatprep.subr.mxu0 0.0
    %228 = vmatpush1.msra.mxu0 0.0
    %229 = vmatprep.subr.mxu0 0.0
    %230 = vmatpush1.msra.mxu0 0.0
    %231 = vmatprep.subr.mxu0 0.0
    %232 = vmatpush1.msra.mxu0 0.0
    %233 = vmatprep.subr.mxu0 0.0
    %234 = vmatpush1.msra.mxu0 0.0
    %235 = vmatprep.subr.mxu0 0.0
    %236 = vmatpush1.msra.mxu0 0.0
    %237 = vmatprep.subr.mxu0 0.0
    %238 = vmatpush1.msra.mxu0 0.0
    %239 = vmatprep.subr.mxu0 0.0
    %240 = vmatpush1.msra.mxu0 0.0
    %241 = vmatprep.subr.mxu0 0.0
    %242 = vmatpush1.msra.mxu0 0.0
    %243 = vmatprep.subr.mxu0 0.0
    %244 = vmatpush1.msra.mxu0 0.0
    %245 = vmatprep.subr.mxu0 0.0
    %246 = vmatpush1.msra.mxu0 0.0
    %247 = vmatprep.subr.mxu0 0.0
    %248 = vmatpush1.msra.mxu0 0.0
    %249 = vmatprep.subr.mxu0 0.0
    %250 = vmatpush1.msra.mxu0 0.0
    %251 = vmatprep.subr.mxu0 0.0
    %252 = vmatpush1.msra.mxu0 0.0
    %253 = vmatprep.subr.mxu0 0.0
    %254 = vmatpush1.msra.mxu0 0.0
    %255 = vmatprep.subr.mxu0 0.0
    %256 = vmatpush1.msra.mxu0 0.0
    %257 = vmatprep.mubr.f32.mxu0 0.0
    %258 = vmatmul.mubr.f32.gmra.mrb[0].mxu0 %v191
    %v259 = vpop.f32.mrb[0].mxu0
    %v260 = vadd.f32 %v187, %v259
    %v261 = vpop.f32.mrb[0].mxu0
    %262 = vdwg.mxu0
    %v263 = vmax.f32 %v260, 0.0
    %v264 = vld [vmem:[#allocation9] sm:$0xff]
    %v265 = vld [vmem:[#allocation9 + $0x8] sm:$0xff]
    %v266 = vld [vmem:[#allocation9 + $0x10] sm:$0xff]
    %v267 = vld [vmem:[#allocation9 + $0x18] sm:$0xff]
    %v268 = vld [vmem:[#allocation9 + $0x20] sm:$0xff]
    %v269 = vld [vmem:[#allocation9 + $0x28] sm:$0xff]
    %v270 = vld [vmem:[#allocation9 + $0x30] sm:$0xff]
    %v271 = vld [vmem:[#allocation9 + $0x38] sm:$0xff]
    %v272 = vld [vmem:[%s6] sm:$0x1]
    %v274 = vlaneseq
    %v275 = vshrl.u32 %v274, 7
    %v276 = vsub.s32 0, %v275
    %v277 = vrot.slane %v272, %v276
    %v280 = vsel %vm189, %v263, 0
    %282 = vmatprep.subr.mxu0 0.0
    %283 = vmatpush1.msra.mxu0 %v264
    %284 = vmatprep.subr.mxu0 0.0
    %285 = vmatpush1.msra.mxu0 %v265
    %286 = vmatprep.subr.mxu0 0.0
    %287 = vmatpush1.msra.mxu0 %v266
    %288 = vmatprep.subr.mxu0 0.0
    %289 = vmatpush1.msra.mxu0 %v267
    %290 = vmatprep.subr.mxu0 0.0
    %291 = vmatpush1.msra.mxu0 %v268
    %292 = vmatprep.subr.mxu0 0.0
    %293 = vmatpush1.msra.mxu0 %v269
    %294 = vmatprep.subr.mxu0 0.0
    %295 = vmatpush1.msra.mxu0 %v270
    %296 = vmatprep.subr.mxu0 0.0
    %297 = vmatpush1.msra.mxu0 %v271
    %298 = vmatprep.subr.mxu0 0.0
    %299 = vmatpush1.msra.mxu0 0.0
    %300 = vmatprep.subr.mxu0 0.0
    %301 = vmatpush1.msra.mxu0 0.0
    %302 = vmatprep.subr.mxu0 0.0
    %303 = vmatpush1.msra.mxu0 0.0
    %304 = vmatprep.subr.mxu0 0.0
    %305 = vmatpush1.msra.mxu0 0.0
    %306 = vmatprep.subr.mxu0 0.0
    %307 = vmatpush1.msra.mxu0 0.0
    %308 = vmatprep.subr.mxu0 0.0
    %309 = vmatpush1.msra.mxu0 0.0
    %310 = vmatprep.subr.mxu0 0.0
    %311 = vmatpush1.msra.mxu0 0.0
    %312 = vmatprep.subr.mxu0 0.0
    %313 = vmatpush1.msra.mxu0 0.0
    %314 = vmatprep.subr.mxu0 0.0
    %315 = vmatpush1.msra.mxu0 0.0
    %316 = vmatprep.subr.mxu0 0.0
    %317 = vmatpush1.msra.mxu0 0.0
    %318 = vmatprep.subr.mxu0 0.0
    %319 = vmatpush1.msra.mxu0 0.0
    %320 = vmatprep.subr.mxu0 0.0
    %321 = vmatpush1.msra.mxu0 0.0
    %322 = vmatprep.subr.mxu0 0.0
    %323 = vmatpush1.msra.mxu0 0.0
    %324 = vmatprep.subr.mxu0 0.0
    %325 = vmatpush1.msra.mxu0 0.0
    %326 = vmatprep.subr.mxu0 0.0
    %327 = vmatpush1.msra.mxu0 0.0
    %328 = vmatprep.subr.mxu0 0.0
    %329 = vmatpush1.msra.mxu0 0.0
    %330 = vmatprep.subr.mxu0 0.0
    %331 = vmatpush1.msra.mxu0 0.0
    %332 = vmatprep.subr.mxu0 0.0
    %333 = vmatpush1.msra.mxu0 0.0
    %334 = vmatprep.subr.mxu0 0.0
    %335 = vmatpush1.msra.mxu0 0.0
    %336 = vmatprep.subr.mxu0 0.0
    %337 = vmatpush1.msra.mxu0 0.0
    %338 = vmatprep.subr.mxu0 0.0
    %339 = vmatpush1.msra.mxu0 0.0
    %340 = vmatprep.subr.mxu0 0.0
    %341 = vmatpush1.msra.mxu0 0.0
    %342 = vmatprep.subr.mxu0 0.0
    %343 = vmatpush1.msra.mxu0 0.0
    %344 = vmatprep.subr.mxu0 0.0
    %345 = vmatpush1.msra.mxu0 0.0
    %346 = vmatprep.mubr.f32.mxu0 0.0
    %347 = vmatmul.mubr.f32.gmra.mrb[0].mxu0 %v280
    %v348 = vpop.f32.mrb[0].mxu0
    %v349 = vadd.f32 %v277, %v348
    %v350 = vpop.f32.mrb[0].mxu0
    %351 = vdwg.mxu0
    %v352 = vmax.f32 %v349, 0.0
    %v353 = vld [vmem:[%s7] sm:$0x1]
    %v354 = vld [vmem:[#allocation2] sm:$0x1]
    %356 = vset.pattern.permute.xlu0 0
    %357 = vperm.xlu0 %356, %v354
    %v358 = vpop.permute.xlu0 %357
    %v360 = vlaneseq
    %v361 = vshrl.u32 %v360, 7
    %v362 = vsub.s32 0, %v361
    %v363 = vrot.slane %v358, %v362
    %v365 = vsel %vm189, %v353, 0
    %v368 = vsel %vm189, %v352, 0
    %370 = vmatprep.subr.mxu0 0.0
    %371 = vmatpush1.xpose.msra.mxu0 %v368
    %372 = vmatprep.subr.mxu0 0.0
    %373 = vmatpush1.xpose.msra.mxu0 0.0
    %374 = vmatprep.subr.mxu0 0.0
    %375 = vmatpush1.xpose.msra.mxu0 0.0
    %376 = vmatprep.subr.mxu0 0.0
    %377 = vmatpush1.xpose.msra.mxu0 0.0
    %378 = vmatprep.subr.mxu0 0.0
    %379 = vmatpush1.xpose.msra.mxu0 0.0
    %380 = vmatprep.subr.mxu0 0.0
    %381 = vmatpush1.xpose.msra.mxu0 0.0
    %382 = vmatprep.subr.mxu0 0.0
    %383 = vmatpush1.xpose.msra.mxu0 0.0
    %384 = vmatprep.subr.mxu0 0.0
    %385 = vmatpush1.xpose.msra.mxu0 0.0
    %386 = vmatprep.subr.mxu0 0.0
    %387 = vmatpush1.xpose.msra.mxu0 0.0
    %388 = vmatprep.subr.mxu0 0.0
    %389 = vmatpush1.xpose.msra.mxu0 0.0
    %390 = vmatprep.subr.mxu0 0.0
    %391 = vmatpush1.xpose.msra.mxu0 0.0
    %392 = vmatprep.subr.mxu0 0.0
    %393 = vmatpush1.xpose.msra.mxu0 0.0
    %394 = vmatprep.subr.mxu0 0.0
    %395 = vmatpush1.xpose.msra.mxu0 0.0
    %396 = vmatprep.subr.mxu0 0.0
    %397 = vmatpush1.xpose.msra.mxu0 0.0
    %398 = vmatprep.subr.mxu0 0.0
    %399 = vmatpush1.xpose.msra.mxu0 0.0
    %400 = vmatprep.subr.mxu0 0.0
    %401 = vmatpush1.xpose.msra.mxu0 0.0
    %402 = vmatprep.subr.mxu0 0.0
    %403 = vmatpush1.xpose.msra.mxu0 0.0
    %404 = vmatprep.subr.mxu0 0.0
    %405 = vmatpush1.xpose.msra.mxu0 0.0
    %406 = vmatprep.subr.mxu0 0.0
    %407 = vmatpush1.xpose.msra.mxu0 0.0
    %408 = vmatprep.subr.mxu0 0.0
    %409 = vmatpush1.xpose.msra.mxu0 0.0
    %410 = vmatprep.subr.mxu0 0.0
    %411 = vmatpush1.xpose.msra.mxu0 0.0
    %412 = vmatprep.subr.mxu0 0.0
    %413 = vmatpush1.xpose.msra.mxu0 0.0
    %414 = vmatprep.subr.mxu0 0.0
    %415 = vmatpush1.xpose.msra.mxu0 0.0
    %416 = vmatprep.subr.mxu0 0.0
    %417 = vmatpush1.xpose.msra.mxu0 0.0
    %418 = vmatprep.subr.mxu0 0.0
    %419 = vmatpush1.xpose.msra.mxu0 0.0
    %420 = vmatprep.subr.mxu0 0.0
    %421 = vmatpush1.xpose.msra.mxu0 0.0
    %422 = vmatprep.subr.mxu0 0.0
    %423 = vmatpush1.xpose.msra.mxu0 0.0
    %424 = vmatprep.subr.mxu0 0.0
    %425 = vmatpush1.xpose.msra.mxu0 0.0
    %426 = vmatprep.subr.mxu0 0.0
    %427 = vmatpush1.xpose.msra.mxu0 0.0
    %428 = vmatprep.subr.mxu0 0.0
    %429 = vmatpush1.xpose.msra.mxu0 0.0
    %430 = vmatprep.subr.mxu0 0.0
    %431 = vmatpush1.xpose.msra.mxu0 0.0
    %432 = vmatprep.subr.mxu0 0.0
    %433 = vmatpush1.xpose.msra.mxu0 0.0
    %434 = vmatprep.mubr.f32.mxu0 0.0
    %435 = vmatmul.mubr.f32.gmra.mrb[0].mxu0 %v365
    %v436 = vpop.f32.mrb[0].mxu0
    %v437 = vadd.f32 %v363, %v436
    %v438 = vpop.f32.mrb[0].mxu0
    %439 = vdwg.mxu0
    %vm440 = vcmask 57344
    %441 = vst.msk [vmem:[#allocation11] sm:$0x1] %vm440, %v437
    // Predicated region
    $region54: #{tpu_custom_call.1} parent=1 // pred_check
      _
    $region55: #{tpu_custom_call.1} parent=1 // pred_check_branch
      %443 = sbr.rel (0) target = $region57
    $region56: #{tpu_custom_call.1} parent=1 // pred_region
      %s445 = ssub.s32 16, 16
      %446 = vsyncadd [#allocation5], %s445
      %s448 = sshll.u32 [#allocation11], 4
      %s449 = int_to_ptr.vmem [resolvable:$true] %s448
      %451 = dma.vmem_to_hbm [thread:$0]  %s449, 16, %s9, [#allocation5]
    $region57: #{tpu_custom_call.1} parent=1 // pred_fallthru
      _
    // Predicated region
    $region58: #{tpu_custom_call.1} parent=1 // pred_check
      _
    $region59: #{tpu_custom_call.1} parent=1 // pred_check_branch
      %453 = sbr.rel (0) target = $region61
    $region60: #{tpu_custom_call.1} parent=1 // pred_region
      %454 = dma.done [#allocation5], 16
    $region61: #{tpu_custom_call.1} parent=1 // pred_fallthru
      _
    %455 = vsyncpa [#allocation4], 1
    %456 = vsyncpa [#allocation7], 1
    %457 = vsyncpa [#allocation10], 1
    %458 = vsyncpa [#allocation5], 1

</llo_original>
